<compile_context>
chip_gen: v6e
topology: v6e:2x2x1
jax: 0.10.0
libtpu: 0.0.40
codegen_flags: <defaults>
</compile_context>

<pallas_src>
import functools

import jax
import jax.numpy as jnp
from jax.experimental import pallas as pl
from jax.experimental.pallas import tpu as pltpu


# ----------------------------------------------------------------------------
# Kernels
# ----------------------------------------------------------------------------
def projection_kernel(text_ref, w_ref, b_ref, q_ref):
    """q = text @ W^T + b, reduced over text_dim tiles (grid axis 0)."""
    @pl.when(pl.program_id(0) == 0)
    def _init():
        q_ref[...] = jnp.zeros_like(q_ref)

    q_ref[...] += jnp.dot(
        text_ref[...], w_ref[...], preferred_element_type=jnp.float32
    )

    @pl.when(pl.program_id(0) == pl.num_programs(0) - 1)
    def _finalize():
        q_ref[...] += b_ref[...]


def fusion_kernel(q_ref, local_ref, seg_ref, mask_ref, out_ref, *, block_b):
    T = q_ref.shape[0]                # B_text
    rows, BL = mask_ref.shape         # block_b*B_text, block_b*L

    q = q_ref[...]                    # [T, D]        (grid-invariant, fetched once)
    loc = local_ref[...]              # [BL, D]       (block_b local elements)
    seg = seg_ref[...]                # [block_b, BL] one-hot segment matrix (invariant)

    # Scores for all block_b local elements in a single NT matmul (no transpose).
    scores = jax.lax.dot_general(
        q, loc, (((1,), (1,)), ((), ())), preferred_element_type=jnp.float32
    )                                 # [T, BL]

    # Per-L-segment softmax on the UN-replicated slab.
    # A single global per-row max is subtracted; the shift cancels within each
    # segment so the result is exact (assumes segments are not >~80 apart in
    # logits, which would underflow exp — not the case for realistic features).
    m = jnp.max(scores, axis=-1, keepdims=True)                     # [T, 1]
    p = jnp.exp(scores - m)                                         # one EUP pass
    denom = jax.lax.dot_general(                                    # per-segment sums
        p, seg, (((1,), (1,)), ((), ())), preferred_element_type=jnp.float32
    )                                                               # [T, block_b]
    inv_cols = jax.lax.dot_general(                                 # spread 1/denom back
        1.0 / denom, seg, (((1,), (0,)), ((), ())),
        preferred_element_type=jnp.float32,
    )                                                               # [T, BL]
    attn = p * inv_cols                                             # normalized, un-replicated

    # Only now build the block-diagonal [rows, BL] slab: one broadcast + one
    # multiply with the precomputed grid-invariant 0/1 mask.
    attn_full = jnp.broadcast_to(attn[None], (block_b, T, BL)).reshape(rows, BL)
    attn_full = attn_full * mask_ref[...]

    # Weighted sum: one dense MXU matmul with a sublane/lane-dense output slab
    # (unmasked vector stores).  block_b is capped so the block-diagonal FLOP
    # waste stays <= ~4x.
    out_ref[...] = jnp.dot(
        attn_full.astype(loc.dtype), loc, preferred_element_type=jnp.float32
    ).astype(out_ref.dtype)


# ----------------------------------------------------------------------------
# Helpers
# ----------------------------------------------------------------------------
def _proj_k_tile(text_dim, local_dim):
    """K-tile for the projection: keep the (tk x local_dim) weight tile small."""
    cap = max(128, (8 * 1024 * 1024) // (8 * local_dim))   # ~8 MiB double-buffered f32
    if text_dim <= cap:
        return text_dim
    for tk in (2048, 1024, 512, 256, 128):
        if tk <= cap and text_dim % tk == 0:
            return tk
    return text_dim                                         # fallback: single step


def _pick_block_b(B_local, B_text, L, D, vmem_budget=12 * 1024 * 1024):
    """Local-batch elements per grid step.

    Constraints: divisor of B_local; 8-aligned local/output slabs (or the full
    batch); block_b*L <= ~1024 lanes; FLOP-waste of the dense block-diagonal
    matmul <= ~4x; estimated VMEM working set under a conservative budget
    (safe on v7x's 64 MiB / v5e's 16 MiB default scoped); >= 2 grid steps
    preferred so both v7x TensorCores get work, dropped when impossible.
    """
    def slabs_ok(bb):
        return bb == B_local or ((bb * L) % 8 == 0 and (bb * B_text) % 8 == 0)

    def vmem_bytes(bb):
        rows, BL = bb * B_text, bb * L
        tiles = 8 * (BL * D + rows * D + B_text * D + bb * BL + rows * BL)  # 2x-buffered f32
        temps = 4 * (4 * B_text * BL + 2 * rows * BL)                        # in-kernel slabs
        return tiles + temps

    waste_cap = 4
    lane_cap = max(1, 1024 // max(L, 1))

    def candidates(require_two_steps):
        return [
            bb for bb in range(1, B_local + 1)
            if B_local % bb == 0
            and slabs_ok(bb)
            and bb <= min(waste_cap, lane_cap)
            and vmem_bytes(bb) <= vmem_budget
            and (not require_two_steps or B_local // bb >= 2)
        ]

    for req in (True, False):
        c = candidates(req)
        if c:
            return max(c)
    return B_local   # always shape-legal (full-array blocks)


# ----------------------------------------------------------------------------
# Wrapper
# ----------------------------------------------------------------------------
def multimodal_fusion(text_features, w_t, bias, local_features, *,
                      block_b=None, compute_dtype=jnp.float32, local_buffering=2):
    B_text, text_dim = text_features.shape
    B_local, L, local_dim = local_features.shape
    assert w_t.shape == (text_dim, local_dim)
    assert bias.shape == (1, local_dim)

    # ---- 1) Projection: K-tiled GEMM with an accumulating output block. ----
    tk = _proj_k_tile(text_dim, local_dim)
    assert text_dim % tk == 0
    q = pl.pallas_call(
        projection_kernel,
        out_shape=jax.ShapeDtypeStruct((B_text, local_dim), jnp.float32),
        grid_spec=pltpu.PrefetchScalarGridSpec(
            num_scalar_prefetch=0,
            grid=(text_dim // tk,),
            in_specs=[
                pl.BlockSpec((B_text, tk), lambda k: (0, k)),
                pl.BlockSpec((tk, local_dim), lambda k: (k, 0)),
                pl.BlockSpec((1, local_dim), lambda k: (0, 0)),
            ],
            out_specs=pl.BlockSpec((B_text, local_dim), lambda k: (0, 0)),
        ),
        compiler_params=pltpu.CompilerParams(
            dimension_semantics=("arbitrary",),          # K is a reduction axis
            vmem_limit_bytes=32 * 1024 * 1024,
        ),
    )(text_features, w_t, bias)

    # ---- 2) Fusion over blocks of local-feature batch elements. ----
    if block_b is None:
        block_b = _pick_block_b(B_local, B_text, L, local_dim)
    assert B_local % block_b == 0, "block_b must divide B_local"
    assert (block_b == B_local) or (
        (block_b * B_text) % 8 == 0 and (block_b * L) % 8 == 0
    ), "block_b must give 8-aligned slabs or cover the whole local batch"

    rows, BL = block_b * B_text, block_b * L

    # Grid-invariant helpers, computed ONCE in the wrapper (not per grid step):
    # one-hot segment matrix and block-diagonal 0/1 mask.
    col_seg = jnp.arange(BL, dtype=jnp.int32) // L
    seg_mat = (jnp.arange(block_b, dtype=jnp.int32)[:, None] == col_seg[None, :]
               ).astype(jnp.float32)                                   # [block_b, BL]
    row_seg = jnp.arange(rows, dtype=jnp.int32) // B_text
    blkdiag_mask = (row_seg[:, None] == col_seg[None, :]).astype(jnp.float32)  # [rows, BL]

    local2d = local_features.reshape(B_local * L, local_dim).astype(compute_dtype)
    q_in = q.astype(compute_dtype)

    local_spec_kwargs = {}
    if local_buffering and local_buffering > 2:
        local_spec_kwargs["pipeline_mode"] = pl.Buffered(local_buffering)

    out2d = pl.pallas_call(
        functools.partial(fusion_kernel, block_b=block_b),
        out_shape=jax.ShapeDtypeStruct((B_local * B_text, local_dim), jnp.float32),
        grid_spec=pltpu.PrefetchScalarGridSpec(
            num_scalar_prefetch=0,
            grid=(B_local // block_b,),
            in_specs=[
                # q: invariant block, fetched once and reused every step
                pl.BlockSpec((B_text, local_dim), lambda b: (0, 0)),
                # block of local features: [block_b*L, D]
                pl.BlockSpec((block_b * L, local_dim), lambda b: (b, 0),
                             **local_spec_kwargs),
                # grid-invariant one-hot segment matrix and block-diagonal mask
                pl.BlockSpec((block_b, BL), lambda b: (0, 0)),
                pl.BlockSpec((rows, BL), lambda b: (0, 0)),
            ],
            out_specs=pl.BlockSpec((rows, local_dim), lambda b: (b, 0)),
        ),
        compiler_params=pltpu.CompilerParams(
            dimension_semantics=("parallel",),   # independent steps; shards across v7x TCs
            vmem_limit_bytes=32 * 1024 * 1024,   # explicit, safe on v5e/v6e/v7x
        ),
    )(q_in, local2d, seg_mat, blkdiag_mask)

    # Layout plumbing only: torch output shape [B_local, B_text, local_dim].
    return out2d.reshape(B_local, B_text, local_dim)


def reference(text_features, w_t, bias, local_features):
    q = text_features @ w_t + bias[0]                          # [B_text, local_dim]
    scores = jnp.einsum("id,bld->bil", q, local_features)      # [B_local, B_text, L]
    attn = jax.nn.softmax(scores, axis=2)
    return jnp.einsum("bil,bld->bid", attn, local_features)    # [B_local, B_text, local_dim]


# ----------------------------------------------------------------------------
# Demo / self-test
# ----------------------------------------------------------------------------
if __name__ == "__main__":
    text_feature_dim = 256
    local_feature_dim = 128
    B_text = 8        # batch of text feature vectors
    B_local = 8       # batch of local feature maps
    L = 16            # number of local feature vectors per map

    key = jax.random.PRNGKey(0)
    k_text, k_local, k_w, k_b = jax.random.split(key, 4)

    # Moderate text-feature scale keeps the (unscaled, as in the PyTorch module)
    # attention logits well-conditioned so the comparison below is stable.
    text_features = 0.1 * jax.random.normal(
        k_text, (B_text, text_feature_dim), dtype=jnp.float32)
    local_features = jax.random.normal(
        k_local, (B_local, L, local_feature_dim), dtype=jnp.float32)

    # Deterministic nn.Linear-style init (uniform(-1/sqrt(fan_in), 1/sqrt(fan_in)))
    bound = 1.0 / (text_feature_dim ** 0.5)
    w_t = jax.random.uniform(k_w, (text_feature_dim, local_feature_dim),
                             minval=-bound, maxval=bound, dtype=jnp.float32)
    bias = jax.random.uniform(k_b, (1, local_feature_dim),
                              minval=-bound, maxval=bound, dtype=jnp.float32)

    fused = multimodal_fusion(text_features, w_t, bias, local_features)
    fused = jax.block_until_ready(fused)

    ref = jax.block_until_ready(reference(text_features, w_t, bias, local_features))
    assert fused.shape == (B_local, B_text, local_feature_dim)
    # Tolerance accommodates the TPU MXU's default (bf16-input) f32 matmul
    # precision in whichever path (Pallas kernel vs XLA reference) uses it;
    # a real indexing/masking bug would produce O(1) errors and still fail.
    assert jnp.allclose(fused, ref, atol=2e-2, rtol=2e-2), "mismatch vs JAX reference"

    print("KERNEL_OK")
</pallas_src>

<mosaic_0001>
module attributes {stable_mosaic.version = 11 : i64} {
  func.func @projection_kernel(%arg0: i32, %arg1: memref<8x256xf32, #tpu.memory_space<vmem>>, %arg2: memref<256x128xf32, #tpu.memory_space<vmem>>, %arg3: memref<1x128xf32, #tpu.memory_space<vmem>>, %arg4: memref<8x128xf32, #tpu.memory_space<vmem>>) attributes {dimension_semantics = [#tpu.dimension_semantics<arbitrary>], iteration_bounds = array<i64: 1>, scalar_prefetch = 0 : i64, scratch_operands = 0 : i64, tpu.core_type = #tpu.core_type<tc>, window_params = [{transform_indices = @transform_0, window_bounds = array<i64: 8, 256>}, {transform_indices = @transform_1, window_bounds = array<i64: 256, 128>}, {pipeline_mode = #tpu.pipeline_mode<synchronous>, transform_indices = @transform_2, window_bounds = array<i64: 1, 128>}, {pipeline_mode = #tpu.pipeline_mode<synchronous>, transform_indices = @transform_3, window_bounds = array<i64: 8, 128>}]} {
    %c0_i32 = arith.constant 0 : i32
    %0 = arith.cmpi eq, %arg0, %c0_i32 : i32
    %1 = arith.extui %0 : i1 to i32
    %c0_i32_0 = arith.constant 0 : i32
    %2 = arith.cmpi ne, %1, %c0_i32_0 : i32
    scf.if %2 {
      %cst_10 = arith.constant 0.000000e+00 : f32
      %12 = vector.broadcast %cst_10 : f32 to vector<8x128xf32>
      %c0_11 = arith.constant 0 : index
      %c0_12 = arith.constant 0 : index
      %13 = vector.load %arg4[%c0_11, %c0_12] : memref<8x128xf32, #tpu.memory_space<vmem>>, vector<8x128xf32>
      tpu.vector_store %arg4[%c0_11, %c0_12], %12 {strides = array<i32>} : memref<8x128xf32, #tpu.memory_space<vmem>>, vector<8x128xf32>,
    } else {
    }
    %c0 = arith.constant 0 : index
    %c0_1 = arith.constant 0 : index
    %3 = vector.load %arg4[%c0, %c0_1] : memref<8x128xf32, #tpu.memory_space<vmem>>, vector<8x128xf32>
    %c0_2 = arith.constant 0 : index
    %c0_3 = arith.constant 0 : index
    %4 = vector.load %arg1[%c0_2, %c0_3] : memref<8x256xf32, #tpu.memory_space<vmem>>, vector<8x256xf32>
    %c0_4 = arith.constant 0 : index
    %c0_5 = arith.constant 0 : index
    %5 = vector.load %arg2[%c0_4, %c0_5] : memref<256x128xf32, #tpu.memory_space<vmem>>, vector<256x128xf32>
    %cst = arith.constant dense<0.000000e+00> : vector<8x128xf32>
    %6 = tpu.matmul %4, %5, %cst {dimension_numbers = #tpu.dot_dimension_numbers<[1], [0], [0], [1], [0, 0, 1, 1], [], []>} : vector<8x256xf32>, vector<256x128xf32>, vector<8x128xf32> -> vector<8x128xf32>
    %7 = arith.addf %3, %6 : vector<8x128xf32>
    %c0_6 = arith.constant 0 : index
    %c0_7 = arith.constant 0 : index
    %8 = vector.load %arg4[%c0_6, %c0_7] : memref<8x128xf32, #tpu.memory_space<vmem>>, vector<8x128xf32>
    tpu.vector_store %arg4[%c0_6, %c0_7], %7 {strides = array<i32>} : memref<8x128xf32, #tpu.memory_space<vmem>>, vector<8x128xf32>,
    %c0_i32_8 = arith.constant 0 : i32
    %9 = arith.cmpi eq, %arg0, %c0_i32_8 : i32
    %10 = arith.extui %9 : i1 to i32
    %c0_i32_9 = arith.constant 0 : i32
    %11 = arith.cmpi ne, %10, %c0_i32_9 : i32
    scf.if %11 {
      %c0_10 = arith.constant 0 : index
      %c0_11 = arith.constant 0 : index
      %12 = vector.load %arg4[%c0_10, %c0_11] : memref<8x128xf32, #tpu.memory_space<vmem>>, vector<8x128xf32>
      %c0_12 = arith.constant 0 : index
      %c0_13 = arith.constant 0 : index
      %13 = vector.load %arg3[%c0_12, %c0_13] : memref<1x128xf32, #tpu.memory_space<vmem>>, vector<1x128xf32>
      %14 = vector.broadcast %13 : vector<1x128xf32> to vector<8x128xf32>
      %15 = arith.addf %12, %14 : vector<8x128xf32>
      %c0_14 = arith.constant 0 : index
      %c0_15 = arith.constant 0 : index
      %16 = vector.load %arg4[%c0_14, %c0_15] : memref<8x128xf32, #tpu.memory_space<vmem>>, vector<8x128xf32>
      tpu.vector_store %arg4[%c0_14, %c0_15], %15 {strides = array<i32>} : memref<8x128xf32, #tpu.memory_space<vmem>>, vector<8x128xf32>,
    } else {
    }
    return
  }
  func.func @transform_0(%arg0: i32) -> (i32, i32) {
    %c0_i32 = arith.constant 0 : i32
    %c0_i32_0 = arith.constant 0 : i32
    return %c0_i32, %arg0 : i32, i32
  }
  func.func @transform_1(%arg0: i32) -> (i32, i32) {
    %c0_i32 = arith.constant 0 : i32
    %c0_i32_0 = arith.constant 0 : i32
    return %arg0, %c0_i32 : i32, i32
  }
  func.func @transform_2(%arg0: i32) -> (i32, i32) {
    %c0_i32 = arith.constant 0 : i32
    %c0_i32_0 = arith.constant 0 : i32
    %c0_i32_1 = arith.constant 0 : i32
    return %c0_i32, %c0_i32_0 : i32, i32
  }
  func.func @transform_3(%arg0: i32) -> (i32, i32) {
    %c0_i32 = arith.constant 0 : i32
    %c0_i32_0 = arith.constant 0 : i32
    %c0_i32_1 = arith.constant 0 : i32
    return %c0_i32, %c0_i32_0 : i32, i32
  }
}

</mosaic_0001>

<llo_original>
// kernel: tpu_custom_call.1
$region0: #{tpu_custom_call.1}
  #allocation0 [shape = 'u32[]', space=smem, size = 0x4, offset = 0x4, fixed_abs, tag = 'smem constant byte address 0x4 - core index']
  #allocation1 [shape = 'u32[144,128]{1,0:T(1,128)}', space=vmem, size = 0x12000, scoped, tag = 'internal scratch']
  %s0 = inlined_call_operand.hbm [shape: f32[8,256], index: 0, kind: input, shape index: {}]
  %s1 = inlined_call_operand.hbm [shape: f32[256,128], index: 1, kind: input, shape index: {}]
  %s2 = inlined_call_operand.vmem [shape: f32[1,128], index: 2, kind: input, shape index: {}]
  %s3 = inlined_call_operand.hbm [shape: f32[8,128], index: 3, kind: output, shape index: {}]
  %s4 = sld [smem:[#allocation0]]
  $region38: #{tpu_custom_call.1} parent=0
    _
  %s6 = ssub.s32 1, %s4
  %s7 = scalar_select 0, %s6, %s4
  $region1: #{tpu_custom_call.1} parent=0
    #allocation2 [shape = 'u8[8192]{0}', space=vmem, size = 0x2000, scoped, tag = 'input window, operand 0, single buffered']
    #allocation3 [shape = 's32[1]{0}', space=sflag, size = 0x4, scoped, tag = 'scoped memory for tpu_custom_call.1']
    #allocation4 [shape = 's32[1]{0}', space=sflag, size = 0x4, scoped, tag = 'scoped memory for tpu_custom_call.1']
    #allocation5 [shape = 'u8[131072]{0}', space=vmem, size = 0x20000, scoped, tag = 'input window, operand 1, single buffered']
    #allocation6 [shape = 's32[1]{0}', space=sflag, size = 0x4, scoped, tag = 'scoped memory for tpu_custom_call.1']
    #allocation7 [shape = 'u8[4096]{0}', space=vmem, size = 0x1000, scoped, tag = 'output window, operand 0, single buffered']
    %8 = vsyncpa [#allocation3], 0
    %9 = vsyncpa [#allocation6], 0
    %10 = vsyncpa [#allocation4], 0
    // Predicated region
    $region2: #{tpu_custom_call.1} parent=1 // pred_check
      _
    $region3: #{tpu_custom_call.1} parent=1 // pred_check_branch
      %12 = sbr.rel (0) target = $region5
    $region4: #{tpu_custom_call.1} parent=1 // pred_region
      %s14 = ssub.s32 256, 256
      %15 = vsyncadd [#allocation3], %s14
      %s17 = sshll.u32 [#allocation2], 4
      %s18 = int_to_ptr.vmem [resolvable:$true] %s17
      %20 = dma.hbm_to_vmem [thread:$0]  %s0, 256, %s18, [#allocation3]
    $region5: #{tpu_custom_call.1} parent=1 // pred_fallthru
      _
    // Predicated region
    $region6: #{tpu_custom_call.1} parent=1 // pred_check
      _
    $region7: #{tpu_custom_call.1} parent=1 // pred_check_branch
      %22 = sbr.rel (0) target = $region9
    $region8: #{tpu_custom_call.1} parent=1 // pred_region
      %s24 = ssub.s32 4096, 4096
      %25 = vsyncadd [#allocation6], %s24
      %s26 = sshll.u32 [#allocation5], 4
      %s27 = int_to_ptr.vmem [resolvable:$true] %s26
      %32 = dma.hbm_to_vmem [thread:$0]  %s1, 4096, %s27, [#allocation6], 128, 128, 8
    $region9: #{tpu_custom_call.1} parent=1 // pred_fallthru
      _
    // Predicated region
    $region10: #{tpu_custom_call.1} parent=1 // pred_check
      _
    $region11: #{tpu_custom_call.1} parent=1 // pred_check_branch
      %34 = sbr.rel (0) target = $region13
    $region12: #{tpu_custom_call.1} parent=1 // pred_region
      _
    $region13: #{tpu_custom_call.1} parent=1 // pred_fallthru
      _
    // Predicated region
    $region14: #{tpu_custom_call.1} parent=1 // pred_check
      _
    $region15: #{tpu_custom_call.1} parent=1 // pred_check_branch
      %36 = sbr.rel (0) target = $region17
    $region16: #{tpu_custom_call.1} parent=1 // pred_region
      %37 = dma.done [#allocation3], 256
    $region17: #{tpu_custom_call.1} parent=1 // pred_fallthru
      _
    // Predicated region
    $region18: #{tpu_custom_call.1} parent=1 // pred_check
      _
    $region19: #{tpu_custom_call.1} parent=1 // pred_check_branch
      %39 = sbr.rel (0) target = $region21
    $region20: #{tpu_custom_call.1} parent=1 // pred_region
      %40 = dma.done [#allocation6], 4096
    $region21: #{tpu_custom_call.1} parent=1 // pred_fallthru
      _
    %p41 = scmp.eq.s32.totalorder 0, 0
    // Predicated region
    $region22: #{tpu_custom_call.1} parent=1 // pred_check
      %p42 = pneg %p41
    $region23: #{tpu_custom_call.1} parent=1 // pred_check_branch
      %44 = sbr.rel (%p42) target = $region25
    $region24: #{tpu_custom_call.1} parent=1 // pred_region
      %45 = vst [vmem:[#allocation7] sm:$0xff] 0.0
    $region25: #{tpu_custom_call.1} parent=1 // pred_fallthru
      _
    %v46 = vld [vmem:[#allocation7] sm:$0xff]
    %v47 = vld [vmem:[#allocation2] sm:$0xff]
    %v48 = vld [vmem:[#allocation2 + $0x8] sm:$0xff]
    %v49 = vld [vmem:[#allocation5] sm:$0xff]
    %v50 = vld [vmem:[#allocation5 + $0x8] sm:$0xff]
    %v51 = vld [vmem:[#allocation5 + $0x10] sm:$0xff]
    %v52 = vld [vmem:[#allocation5 + $0x18] sm:$0xff]
    %v53 = vld [vmem:[#allocation5 + $0x20] sm:$0xff]
    %v54 = vld [vmem:[#allocation5 + $0x28] sm:$0xff]
    %v55 = vld [vmem:[#allocation5 + $0x30] sm:$0xff]
    %v56 = vld [vmem:[#allocation5 + $0x38] sm:$0xff]
    %v57 = vld [vmem:[#allocation5 + $0x40] sm:$0xff]
    %v58 = vld [vmem:[#allocation5 + $0x48] sm:$0xff]
    %v59 = vld [vmem:[#allocation5 + $0x50] sm:$0xff]
    %v60 = vld [vmem:[#allocation5 + $0x58] sm:$0xff]
    %v61 = vld [vmem:[#allocation5 + $0x60] sm:$0xff]
    %v62 = vld [vmem:[#allocation5 + $0x68] sm:$0xff]
    %v63 = vld [vmem:[#allocation5 + $0x70] sm:$0xff]
    %v64 = vld [vmem:[#allocation5 + $0x78] sm:$0xff]
    %v65 = vld [vmem:[#allocation5 + $0x80] sm:$0xff]
    %v66 = vld [vmem:[#allocation5 + $0x88] sm:$0xff]
    %v67 = vld [vmem:[#allocation5 + $0x90] sm:$0xff]
    %v68 = vld [vmem:[#allocation5 + $0x98] sm:$0xff]
    %v69 = vld [vmem:[#allocation5 + $0xa0] sm:$0xff]
    %v70 = vld [vmem:[#allocation5 + $0xa8] sm:$0xff]
    %v71 = vld [vmem:[#allocation5 + $0xb0] sm:$0xff]
    %v72 = vld [vmem:[#allocation5 + $0xb8] sm:$0xff]
    %v73 = vld [vmem:[#allocation5 + $0xc0] sm:$0xff]
    %v74 = vld [vmem:[#allocation5 + $0xc8] sm:$0xff]
    %v75 = vld [vmem:[#allocation5 + $0xd0] sm:$0xff]
    %v76 = vld [vmem:[#allocation5 + $0xd8] sm:$0xff]
    %v77 = vld [vmem:[#allocation5 + $0xe0] sm:$0xff]
    %v78 = vld [vmem:[#allocation5 + $0xe8] sm:$0xff]
    %v79 = vld [vmem:[#allocation5 + $0xf0] sm:$0xff]
    %v80 = vld [vmem:[#allocation5 + $0xf8] sm:$0xff]
    %81 = vmatprep.subr.mxu0 0.0
    %82 = vmatpush1.msra.mxu0 %v64
    %83 = vmatprep.subr.mxu0 0.0
    %84 = vmatpush1.msra.mxu0 %v63
    %85 = vmatprep.subr.mxu0 0.0
    %86 = vmatpush1.msra.mxu0 %v62
    %87 = vmatprep.subr.mxu0 0.0
    %88 = vmatpush1.msra.mxu0 %v61
    %89 = vmatprep.subr.mxu0 0.0
    %90 = vmatpush1.msra.mxu0 %v60
    %91 = vmatprep.subr.mxu0 0.0
    %92 = vmatpush1.msra.mxu0 %v59
    %93 = vmatprep.subr.mxu0 0.0
    %94 = vmatpush1.msra.mxu0 %v58
    %95 = vmatprep.subr.mxu0 0.0
    %96 = vmatpush1.msra.mxu0 %v57
    %97 = vmatprep.subr.mxu0 0.0
    %98 = vmatpush1.msra.mxu0 %v56
    %99 = vmatprep.subr.mxu0 0.0
    %100 = vmatpush1.msra.mxu0 %v55
    %101 = vmatprep.subr.mxu0 0.0
    %102 = vmatpush1.msra.mxu0 %v54
    %103 = vmatprep.subr.mxu0 0.0
    %104 = vmatpush1.msra.mxu0 %v53
    %105 = vmatprep.subr.mxu0 0.0
    %106 = vmatpush1.msra.mxu0 %v52
    %107 = vmatprep.subr.mxu0 0.0
    %108 = vmatpush1.msra.mxu0 %v51
    %109 = vmatprep.subr.mxu0 0.0
    %110 = vmatpush1.msra.mxu0 %v50
    %111 = vmatprep.subr.mxu0 0.0
    %112 = vmatpush1.msra.mxu0 %v49
    %113 = vmatprep.subr.mxu0 0.0
    %114 = vmatpush2.msra.mxu0 %v80
    %115 = vmatprep.subr.mxu0 0.0
    %116 = vmatpush2.msra.mxu0 %v79
    %117 = vmatprep.subr.mxu0 0.0
    %118 = vmatpush2.msra.mxu0 %v78
    %119 = vmatprep.subr.mxu0 0.0
    %120 = vmatpush2.msra.mxu0 %v77
    %121 = vmatprep.subr.mxu0 0.0
    %122 = vmatpush2.msra.mxu0 %v76
    %123 = vmatprep.subr.mxu0 0.0
    %124 = vmatpush2.msra.mxu0 %v75
    %125 = vmatprep.subr.mxu0 0.0
    %126 = vmatpush2.msra.mxu0 %v74
    %127 = vmatprep.subr.mxu0 0.0
    %128 = vmatpush2.msra.mxu0 %v73
    %129 = vmatprep.subr.mxu0 0.0
    %130 = vmatpush2.msra.mxu0 %v72
    %131 = vmatprep.subr.mxu0 0.0
    %132 = vmatpush2.msra.mxu0 %v71
    %133 = vmatprep.subr.mxu0 0.0
    %134 = vmatpush2.msra.mxu0 %v70
    %135 = vmatprep.subr.mxu0 0.0
    %136 = vmatpush2.msra.mxu0 %v69
    %137 = vmatprep.subr.mxu0 0.0
    %138 = vmatpush2.msra.mxu0 %v68
    %139 = vmatprep.subr.mxu0 0.0
    %140 = vmatpush2.msra.mxu0 %v67
    %141 = vmatprep.subr.mxu0 0.0
    %142 = vmatpush2.msra.mxu0 %v66
    %143 = vmatprep.subr.mxu0 0.0
    %144 = vmatpush2.msra.mxu0 %v65
    %145 = vmatprep.mubr.f32.mxu0 %v48
    %146 = vmatmul.mubr.f32.gmra.mxu0 %v47
    %v147 = vpop.f32.mrf.mxu0
    %v148 = vadd.f32 0.0, %v147
    %v149 = vpop.f32.mrf.mxu0
    %150 = vdwg.mxu0
    %v151 = vadd.f32 %v46, %v148
    %152 = vst [vmem:[#allocation7] sm:$0xff] %v151
    // Predicated region
    $region26: #{tpu_custom_call.1} parent=1 // pred_check
      %p153 = pneg %p41
    $region27: #{tpu_custom_call.1} parent=1 // pred_check_branch
      %155 = sbr.rel (%p153) target = $region29
    $region28: #{tpu_custom_call.1} parent=1 // pred_region
      %v156 = vld [vmem:[#allocation7] sm:$0xff]
      %v157 = vld [vmem:[%s2] sm:$0x1]
      %v159 = vlaneseq
      %v160 = vshrl.u32 %v159, 7
      %v161 = vsub.s32 0, %v160
      %v162 = vrot.slane %v157, %v161
      %v164 = vadd.f32 %v156, %v162
      %165 = vst [vmem:[#allocation7] sm:$0xff] %v164
    $region29: #{tpu_custom_call.1} parent=1 // pred_fallthru
      _
    // Predicated region
    $region30: #{tpu_custom_call.1} parent=1 // pred_check
      _
    $region31: #{tpu_custom_call.1} parent=1 // pred_check_branch
      %167 = sbr.rel (0) target = $region33
    $region32: #{tpu_custom_call.1} parent=1 // pred_region
      %s169 = ssub.s32 128, 128
      %170 = vsyncadd [#allocation4], %s169
      %s172 = sshll.u32 [#allocation7], 4
      %s173 = int_to_ptr.vmem [resolvable:$true] %s172
      %175 = dma.vmem_to_hbm [thread:$0]  %s173, 128, %s3, [#allocation4]
    $region33: #{tpu_custom_call.1} parent=1 // pred_fallthru
      _
    // Predicated region
    $region34: #{tpu_custom_call.1} parent=1 // pred_check
      _
    $region35: #{tpu_custom_call.1} parent=1 // pred_check_branch
      %177 = sbr.rel (0) target = $region37
    $region36: #{tpu_custom_call.1} parent=1 // pred_region
      %178 = dma.done [#allocation4], 128
    $region37: #{tpu_custom_call.1} parent=1 // pred_fallthru
      _
    %179 = vsyncpa [#allocation3], 1
    %180 = vsyncpa [#allocation6], 1
    %181 = vsyncpa [#allocation4], 1

</llo_original>
